<compile_context>
chip_gen: v6e
topology: v6e:2x2x1
jax: 0.10.0
libtpu: 0.0.40
codegen_flags: <defaults>
</compile_context>

<pallas_src>
import math

import jax
import jax.numpy as jnp
from jax.experimental import pallas as pl
from jax.experimental.pallas import tpu as pltpu

_LANE = 128
_SUBLANE = 8


def _round_up(x, m):
    return (x + m - 1) // m * m


def gru_cell_kernel(xh_ref, h_ref, w_ref, b_ref, h_out_ref):
    # One fused MXU matmul: [x | h] @ [[Wx]; [Wh]] -> (Bp, 4*Hp), f32 accumulate.
    gates = (
        jnp.dot(xh_ref[...], w_ref[...], preferred_element_type=jnp.float32)
        + b_ref[...]
    )
    hp = h_ref.shape[1]  # lane-aligned padded hidden width (multiple of 128)
    r = jax.nn.sigmoid(gates[:, 0 * hp:1 * hp])
    z = jax.nn.sigmoid(gates[:, 1 * hp:2 * hp])
    n = jnp.tanh(gates[:, 2 * hp:3 * hp] + r * gates[:, 3 * hp:4 * hp])
    h = h_ref[...]
    h_out_ref[...] = ((1.0 - z) * n + z * h).astype(h_out_ref.dtype)


def gru_cell(x, hidden, w_fused, b_fused, hidden_size):
    """One GRU step. `hidden=None` mirrors the PyTorch `hidden=False` default."""
    B, I = x.shape
    Hp = w_fused.shape[1] // 4
    if hidden is None:
        hidden = jnp.zeros((B, hidden_size), x.dtype)

    Bp = _round_up(B, _SUBLANE)
    x_pad = jnp.zeros((Bp, I), x.dtype).at[:B, :].set(x)
    h_pad = jnp.zeros((Bp, Hp), x.dtype).at[:B, :hidden_size].set(hidden)
    xh = jnp.concatenate([x_pad, h_pad], axis=1)  # (Bp, I + Hp)

    vmem = pl.BlockSpec(memory_space=pltpu.MemorySpace.VMEM)
    h_new_pad = pl.pallas_call(
        gru_cell_kernel,
        out_shape=jax.ShapeDtypeStruct((Bp, Hp), x.dtype),
        in_specs=[vmem, vmem, vmem, vmem],
        out_specs=vmem,
    )(xh, h_pad, w_fused, b_fused)
    return h_new_pad[:B, :hidden_size]


def init_params(key, input_size, hidden_size, dtype=jnp.float32):
    """Parameter init mirroring the PyTorch module.

    nn.Linear(in, out) stores weight (out, in); we keep the transpose (in, out).
    Wir/Wiz/Win weights are explicitly re-initialized with bound 1/sqrt(hidden);
    Whr/Whz/Whn weights use the default bound 1/sqrt(hidden) as well.
    Biases keep the default nn.Linear bound 1/sqrt(fan_in):
      input-side biases -> 1/sqrt(input_size), hidden-side -> 1/sqrt(hidden_size).
    """
    keys = jax.random.split(key, 12)
    bnd_h = 1.0 / math.sqrt(hidden_size)
    bnd_x = 1.0 / math.sqrt(input_size)

    def u(k, shape, bound):
        return jax.random.uniform(k, shape, dtype, minval=-bound, maxval=bound)

    return {
        "wir": u(keys[0], (input_size, hidden_size), bnd_h),
        "wiz": u(keys[1], (input_size, hidden_size), bnd_h),
        "win": u(keys[2], (input_size, hidden_size), bnd_h),
        "whr": u(keys[3], (hidden_size, hidden_size), bnd_h),
        "whz": u(keys[4], (hidden_size, hidden_size), bnd_h),
        "whn": u(keys[5], (hidden_size, hidden_size), bnd_h),
        "bir": u(keys[6], (hidden_size,), bnd_x),
        "biz": u(keys[7], (hidden_size,), bnd_x),
        "bin": u(keys[8], (hidden_size,), bnd_x),
        "bhr": u(keys[9], (hidden_size,), bnd_h),
        "bhz": u(keys[10], (hidden_size,), bnd_h),
        "bhn": u(keys[11], (hidden_size,), bnd_h),
    }


def fuse_params(p, input_size, hidden_size, dtype=jnp.float32):
    """Build the fused, lane-padded weight (I+Hp, 4Hp) and bias (1, 4Hp).

    Column blocks (each Hp wide): [r_pre | z_pre | n_x_pre | n_h_pre].
    Row blocks: rows [0, I) act on x, rows [I, I+Hp) act on (padded) h.
    Zero padding keeps the padded hidden lanes at exactly 0 through the GRU
    update (r=z=0.5, n=0 -> h'=0), so the slice back to H is exact.
    """
    I, H = input_size, hidden_size
    Hp = _round_up(H, _LANE)

    w = jnp.zeros((I + Hp, 4 * Hp), dtype)
    # x-side contributions
    w = w.at[:I, 0 * Hp:0 * Hp + H].set(p["wir"])
    w = w.at[:I, 1 * Hp:1 * Hp + H].set(p["wiz"])
    w = w.at[:I, 2 * Hp:2 * Hp + H].set(p["win"])
    # h-side contributions
    w = w.at[I:I + H, 0 * Hp:0 * Hp + H].set(p["whr"])
    w = w.at[I:I + H, 1 * Hp:1 * Hp + H].set(p["whz"])
    w = w.at[I:I + H, 3 * Hp:3 * Hp + H].set(p["whn"])

    b = jnp.zeros((1, 4 * Hp), dtype)
    b = b.at[0, 0 * Hp:0 * Hp + H].set(p["bir"] + p["bhr"])
    b = b.at[0, 1 * Hp:1 * Hp + H].set(p["biz"] + p["bhz"])
    b = b.at[0, 2 * Hp:2 * Hp + H].set(p["bin"])
    b = b.at[0, 3 * Hp:3 * Hp + H].set(p["bhn"])
    return w, b


def reference_gru_cell(x, h, p):
    r = jax.nn.sigmoid(x @ p["wir"] + p["bir"] + h @ p["whr"] + p["bhr"])
    z = jax.nn.sigmoid(x @ p["wiz"] + p["biz"] + h @ p["whz"] + p["bhz"])
    n = jnp.tanh(x @ p["win"] + p["bin"] + r * (h @ p["whn"] + p["bhn"]))
    return (1.0 - z) * n + z * h


if __name__ == "__main__":
    batch = 8
    input_size = 16
    hidden_size = 32

    key = jax.random.PRNGKey(0)
    kx, kh, kp = jax.random.split(key, 3)

    x = jax.random.normal(kx, (batch, input_size), jnp.float32)
    h0 = jax.random.normal(kh, (batch, hidden_size), jnp.float32)

    params = init_params(kp, input_size, hidden_size)
    w_fused, b_fused = fuse_params(params, input_size, hidden_size)

    # Explicit hidden state
    h1 = gru_cell(x, h0, w_fused, b_fused, hidden_size)
    jax.block_until_ready(h1)
    h1_ref = reference_gru_cell(x, h0, params)
    assert jnp.allclose(h1, h1_ref, atol=1e-5, rtol=1e-5)

    # Default zero hidden state (PyTorch `hidden=False` branch)
    h2 = gru_cell(x, None, w_fused, b_fused, hidden_size)
    jax.block_until_ready(h2)
    h2_ref = reference_gru_cell(
        x, jnp.zeros((batch, hidden_size), jnp.float32), params)
    assert jnp.allclose(h2, h2_ref, atol=1e-5, rtol=1e-5)

    print("KERNEL_OK")
</pallas_src>

<mosaic_0001>
module attributes {stable_mosaic.version = 11 : i64} {
  func.func @gru_cell_kernel(%arg0: memref<8x144xf32, #tpu.memory_space<vmem>>, %arg1: memref<8x128xf32, #tpu.memory_space<vmem>>, %arg2: memref<144x512xf32, #tpu.memory_space<vmem>>, %arg3: memref<1x512xf32, #tpu.memory_space<vmem>>, %arg4: memref<8x128xf32, #tpu.memory_space<vmem>>) attributes {dimension_semantics = [], scalar_prefetch = 0 : i64, scratch_operands = 0 : i64, tpu.core_type = #tpu.core_type<tc>} {
    %c0 = arith.constant 0 : index
    %c0_0 = arith.constant 0 : index
    %0 = vector.load %arg0[%c0, %c0_0] : memref<8x144xf32, #tpu.memory_space<vmem>>, vector<8x144xf32>
    %c0_1 = arith.constant 0 : index
    %c0_2 = arith.constant 0 : index
    %1 = vector.load %arg2[%c0_1, %c0_2] : memref<144x512xf32, #tpu.memory_space<vmem>>, vector<144x512xf32>
    %cst = arith.constant dense<0.000000e+00> : vector<8x512xf32>
    %2 = tpu.matmul %0, %1, %cst {dimension_numbers = #tpu.dot_dimension_numbers<[1], [0], [0], [1], [0, 0, 1, 1], [], []>} : vector<8x144xf32>, vector<144x512xf32>, vector<8x512xf32> -> vector<8x512xf32>
    %c0_3 = arith.constant 0 : index
    %c0_4 = arith.constant 0 : index
    %3 = vector.load %arg3[%c0_3, %c0_4] : memref<1x512xf32, #tpu.memory_space<vmem>>, vector<1x512xf32>
    %4 = vector.broadcast %3 : vector<1x512xf32> to vector<8x512xf32>
    %5 = arith.addf %2, %4 : vector<8x512xf32>
    %6 = vector.extract_strided_slice %5 {offsets = [0, 0], sizes = [8, 128], strides = [1, 1]} : vector<8x512xf32> to vector<8x128xf32>
    %7 = arith.negf %6 : vector<8x128xf32>
    %8 = math.exp %7 : vector<8x128xf32>
    %cst_5 = arith.constant 1.000000e+00 : f32
    %9 = vector.broadcast %cst_5 : f32 to vector<8x128xf32>
    %10 = arith.addf %9, %8 : vector<8x128xf32>
    %11 = arith.divf %9, %10 : vector<8x128xf32>
    %12 = vector.extract_strided_slice %5 {offsets = [0, 128], sizes = [8, 128], strides = [1, 1]} : vector<8x512xf32> to vector<8x128xf32>
    %13 = arith.negf %12 : vector<8x128xf32>
    %14 = math.exp %13 : vector<8x128xf32>
    %cst_6 = arith.constant 1.000000e+00 : f32
    %15 = vector.broadcast %cst_6 : f32 to vector<8x128xf32>
    %16 = arith.addf %15, %14 : vector<8x128xf32>
    %17 = arith.divf %15, %16 : vector<8x128xf32>
    %18 = vector.extract_strided_slice %5 {offsets = [0, 256], sizes = [8, 128], strides = [1, 1]} : vector<8x512xf32> to vector<8x128xf32>
    %19 = vector.extract_strided_slice %5 {offsets = [0, 384], sizes = [8, 128], strides = [1, 1]} : vector<8x512xf32> to vector<8x128xf32>
    %20 = arith.mulf %11, %19 : vector<8x128xf32>
    %21 = arith.addf %18, %20 : vector<8x128xf32>
    %22 = math.tanh %21 : vector<8x128xf32>
    %c0_7 = arith.constant 0 : index
    %c0_8 = arith.constant 0 : index
    %23 = vector.load %arg1[%c0_7, %c0_8] : memref<8x128xf32, #tpu.memory_space<vmem>>, vector<8x128xf32>
    %cst_9 = arith.constant 1.000000e+00 : f32
    %24 = vector.broadcast %cst_9 : f32 to vector<8x128xf32>
    %25 = arith.subf %24, %17 : vector<8x128xf32>
    %26 = arith.mulf %25, %22 : vector<8x128xf32>
    %27 = arith.mulf %17, %23 : vector<8x128xf32>
    %28 = arith.addf %26, %27 : vector<8x128xf32>
    %c0_10 = arith.constant 0 : index
    %c0_11 = arith.constant 0 : index
    %29 = vector.load %arg4[%c0_10, %c0_11] : memref<8x128xf32, #tpu.memory_space<vmem>>, vector<8x128xf32>
    tpu.vector_store %arg4[%c0_10, %c0_11], %28 {strides = array<i32>} : memref<8x128xf32, #tpu.memory_space<vmem>>, vector<8x128xf32>,
    return
  }
}

</mosaic_0001>

<llo_original>
// kernel: tpu_custom_call.1
$region0: #{tpu_custom_call.1}
  #allocation0 [shape = 'u32[]', space=smem, size = 0x4, offset = 0x4, fixed_abs, tag = 'smem constant byte address 0x4 - core index']
  #allocation1 [shape = 'u32[144,128]{1,0:T(1,128)}', space=vmem, size = 0x12000, scoped, tag = 'internal scratch']
  %s0 = inlined_call_operand.hbm [shape: f32[8,144], index: 0, kind: input, shape index: {}]
  %s1 = inlined_call_operand.hbm [shape: f32[8,128], index: 1, kind: input, shape index: {}]
  %s2 = inlined_call_operand.hbm [shape: f32[144,512], index: 2, kind: input, shape index: {}]
  %s3 = inlined_call_operand.vmem [shape: f32[1,512], index: 3, kind: input, shape index: {}]
  %s4 = inlined_call_operand.hbm [shape: f32[8,128], index: 4, kind: output, shape index: {}]
  %s5 = sld [smem:[#allocation0]]
  $region38: #{tpu_custom_call.1} parent=0
    _
  %s7 = ssub.s32 1, %s5
  %s8 = scalar_select 0, %s7, %s5
  $region1: #{tpu_custom_call.1} parent=0
    #allocation2 [shape = 'u8[8192]{0}', space=vmem, size = 0x2000, scoped, tag = 'input window, operand 0, single buffered']
    #allocation3 [shape = 's32[1]{0}', space=sflag, size = 0x4, scoped, tag = 'scoped memory for tpu_custom_call.1']
    #allocation4 [shape = 's32[1]{0}', space=sflag, size = 0x4, scoped, tag = 'scoped memory for tpu_custom_call.1']
    #allocation5 [shape = 'u8[4096]{0}', space=vmem, size = 0x1000, scoped, tag = 'input window, operand 1, single buffered']
    #allocation6 [shape = 's32[1]{0}', space=sflag, size = 0x4, scoped, tag = 'scoped memory for tpu_custom_call.1']
    #allocation7 [shape = 'u8[294912]{0}', space=vmem, size = 0x48000, scoped, tag = 'input window, operand 2, single buffered']
    #allocation8 [shape = 'u8[4096]{0}', space=vmem, size = 0x1000, scoped, tag = 'output window, operand 0, single buffered']
    %9 = vsyncpa [#allocation3], 0
    %10 = vsyncpa [#allocation6], 0
    %11 = vsyncpa [#allocation4], 0
    // Predicated region
    $region2: #{tpu_custom_call.1} parent=1 // pred_check
      _
    $region3: #{tpu_custom_call.1} parent=1 // pred_check_branch
      %13 = sbr.rel (0) target = $region5
    $region4: #{tpu_custom_call.1} parent=1 // pred_region
      %s15 = ssub.s32 256, 256
      %16 = vsyncadd [#allocation3], %s15
      %s18 = sshll.u32 [#allocation2], 4
      %s19 = int_to_ptr.vmem [resolvable:$true] %s18
      %21 = dma.hbm_to_vmem [thread:$0]  %s0, 256, %s19, [#allocation3]
    $region5: #{tpu_custom_call.1} parent=1 // pred_fallthru
      _
    // Predicated region
    $region6: #{tpu_custom_call.1} parent=1 // pred_check
      _
    $region7: #{tpu_custom_call.1} parent=1 // pred_check_branch
      %23 = sbr.rel (0) target = $region9
    $region8: #{tpu_custom_call.1} parent=1 // pred_region
      %s25 = ssub.s32 128, 128
      %26 = vsyncadd [#allocation6], %s25
      %s28 = sshll.u32 [#allocation5], 4
      %s29 = int_to_ptr.vmem [resolvable:$true] %s28
      %31 = dma.hbm_to_vmem [thread:$0]  %s1, 128, %s29, [#allocation6]
    $region9: #{tpu_custom_call.1} parent=1 // pred_fallthru
      _
    // Predicated region
    $region10: #{tpu_custom_call.1} parent=1 // pred_check
      _
    $region11: #{tpu_custom_call.1} parent=1 // pred_check_branch
      %33 = sbr.rel (0) target = $region13
    $region12: #{tpu_custom_call.1} parent=1 // pred_region
      %s35 = ssub.s32 9216, 9216
      %36 = vsyncadd [#allocation6], %s35
      %s37 = sshll.u32 [#allocation7], 4
      %s38 = int_to_ptr.vmem [resolvable:$true] %s37
      %43 = dma.hbm_to_vmem [thread:$0]  %s2, 9216, %s38, [#allocation6], 512, 512, 32
    $region13: #{tpu_custom_call.1} parent=1 // pred_fallthru
      _
    // Predicated region
    $region14: #{tpu_custom_call.1} parent=1 // pred_check
      _
    $region15: #{tpu_custom_call.1} parent=1 // pred_check_branch
      %45 = sbr.rel (0) target = $region17
    $region16: #{tpu_custom_call.1} parent=1 // pred_region
      _
    $region17: #{tpu_custom_call.1} parent=1 // pred_fallthru
      _
    // Predicated region
    $region18: #{tpu_custom_call.1} parent=1 // pred_check
      _
    $region19: #{tpu_custom_call.1} parent=1 // pred_check_branch
      %47 = sbr.rel (0) target = $region21
    $region20: #{tpu_custom_call.1} parent=1 // pred_region
      %48 = dma.done [#allocation3], 256
    $region21: #{tpu_custom_call.1} parent=1 // pred_fallthru
      _
    // Predicated region
    $region22: #{tpu_custom_call.1} parent=1 // pred_check
      _
    $region23: #{tpu_custom_call.1} parent=1 // pred_check_branch
      %50 = sbr.rel (0) target = $region25
    $region24: #{tpu_custom_call.1} parent=1 // pred_region
      %51 = dma.done [#allocation6], 128
    $region25: #{tpu_custom_call.1} parent=1 // pred_fallthru
      _
    // Predicated region
    $region26: #{tpu_custom_call.1} parent=1 // pred_check
      _
    $region27: #{tpu_custom_call.1} parent=1 // pred_check_branch
      %53 = sbr.rel (0) target = $region29
    $region28: #{tpu_custom_call.1} parent=1 // pred_region
      %54 = dma.done [#allocation6], 9216
    $region29: #{tpu_custom_call.1} parent=1 // pred_fallthru
      _
    %v55 = vld [vmem:[#allocation2] sm:$0xff]
    %v56 = vld [vmem:[#allocation2 + $0x8] sm:$0xff]
    %v57 = vld [vmem:[#allocation7] sm:$0xff]
    %v58 = vld [vmem:[#allocation7 + $0x8] sm:$0xff]
    %v59 = vld [vmem:[#allocation7 + $0x10] sm:$0xff]
    %v60 = vld [vmem:[#allocation7 + $0x18] sm:$0xff]
    %v61 = vld [vmem:[#allocation7 + $0x20] sm:$0xff]
    %v62 = vld [vmem:[#allocation7 + $0x28] sm:$0xff]
    %v63 = vld [vmem:[#allocation7 + $0x30] sm:$0xff]
    %v64 = vld [vmem:[#allocation7 + $0x38] sm:$0xff]
    %v65 = vld [vmem:[#allocation7 + $0x40] sm:$0xff]
    %v66 = vld [vmem:[#allocation7 + $0x48] sm:$0xff]
    %v67 = vld [vmem:[#allocation7 + $0x50] sm:$0xff]
    %v68 = vld [vmem:[#allocation7 + $0x58] sm:$0xff]
    %v69 = vld [vmem:[#allocation7 + $0x60] sm:$0xff]
    %v70 = vld [vmem:[#allocation7 + $0x68] sm:$0xff]
    %v71 = vld [vmem:[#allocation7 + $0x70] sm:$0xff]
    %v72 = vld [vmem:[#allocation7 + $0x78] sm:$0xff]
    %v73 = vld [vmem:[#allocation7 + $0x80] sm:$0xff]
    %v74 = vld [vmem:[#allocation7 + $0x88] sm:$0xff]
    %v75 = vld [vmem:[#allocation7 + $0x90] sm:$0xff]
    %v76 = vld [vmem:[#allocation7 + $0x98] sm:$0xff]
    %v77 = vld [vmem:[#allocation7 + $0xa0] sm:$0xff]
    %v78 = vld [vmem:[#allocation7 + $0xa8] sm:$0xff]
    %v79 = vld [vmem:[#allocation7 + $0xb0] sm:$0xff]
    %v80 = vld [vmem:[#allocation7 + $0xb8] sm:$0xff]
    %v81 = vld [vmem:[#allocation7 + $0xc0] sm:$0xff]
    %v82 = vld [vmem:[#allocation7 + $0xc8] sm:$0xff]
    %v83 = vld [vmem:[#allocation7 + $0xd0] sm:$0xff]
    %v84 = vld [vmem:[#allocation7 + $0xd8] sm:$0xff]
    %v85 = vld [vmem:[#allocation7 + $0xe0] sm:$0xff]
    %v86 = vld [vmem:[#allocation7 + $0xe8] sm:$0xff]
    %v87 = vld [vmem:[#allocation7 + $0xf0] sm:$0xff]
    %v88 = vld [vmem:[#allocation7 + $0xf8] sm:$0xff]
    %v89 = vld [vmem:[#allocation7 + $0x100] sm:$0xff]
    %v90 = vld [vmem:[#allocation7 + $0x108] sm:$0xff]
    %v91 = vld [vmem:[#allocation7 + $0x110] sm:$0xff]
    %v92 = vld [vmem:[#allocation7 + $0x118] sm:$0xff]
    %v93 = vld [vmem:[#allocation7 + $0x120] sm:$0xff]
    %v94 = vld [vmem:[#allocation7 + $0x128] sm:$0xff]
    %v95 = vld [vmem:[#allocation7 + $0x130] sm:$0xff]
    %v96 = vld [vmem:[#allocation7 + $0x138] sm:$0xff]
    %v97 = vld [vmem:[#allocation7 + $0x140] sm:$0xff]
    %v98 = vld [vmem:[#allocation7 + $0x148] sm:$0xff]
    %v99 = vld [vmem:[#allocation7 + $0x150] sm:$0xff]
    %v100 = vld [vmem:[#allocation7 + $0x158] sm:$0xff]
    %v101 = vld [vmem:[#allocation7 + $0x160] sm:$0xff]
    %v102 = vld [vmem:[#allocation7 + $0x168] sm:$0xff]
    %v103 = vld [vmem:[#allocation7 + $0x170] sm:$0xff]
    %v104 = vld [vmem:[#allocation7 + $0x178] sm:$0xff]
    %v105 = vld [vmem:[#allocation7 + $0x180] sm:$0xff]
    %v106 = vld [vmem:[#allocation7 + $0x188] sm:$0xff]
    %v107 = vld [vmem:[#allocation7 + $0x190] sm:$0xff]
    %v108 = vld [vmem:[#allocation7 + $0x198] sm:$0xff]
    %v109 = vld [vmem:[#allocation7 + $0x1a0] sm:$0xff]
    %v110 = vld [vmem:[#allocation7 + $0x1a8] sm:$0xff]
    %v111 = vld [vmem:[#allocation7 + $0x1b0] sm:$0xff]
    %v112 = vld [vmem:[#allocation7 + $0x1b8] sm:$0xff]
    %v113 = vld [vmem:[#allocation7 + $0x1c0] sm:$0xff]
    %v114 = vld [vmem:[#allocation7 + $0x1c8] sm:$0xff]
    %v115 = vld [vmem:[#allocation7 + $0x1d0] sm:$0xff]
    %v116 = vld [vmem:[#allocation7 + $0x1d8] sm:$0xff]
    %v117 = vld [vmem:[#allocation7 + $0x1e0] sm:$0xff]
    %v118 = vld [vmem:[#allocation7 + $0x1e8] sm:$0xff]
    %v119 = vld [vmem:[#allocation7 + $0x1f0] sm:$0xff]
    %v120 = vld [vmem:[#allocation7 + $0x1f8] sm:$0xff]
    %v121 = vld [vmem:[#allocation7 + $0x200] sm:$0xff]
    %v122 = vld [vmem:[#allocation7 + $0x208] sm:$0xff]
    %v123 = vld [vmem:[#allocation7 + $0x210] sm:$0xff]
    %v124 = vld [vmem:[#allocation7 + $0x218] sm:$0xff]
    %v125 = vld [vmem:[#allocation7 + $0x220] sm:$0xff]
    %v126 = vld [vmem:[#allocation7 + $0x228] sm:$0xff]
    %v127 = vld [vmem:[#allocation7 + $0x230] sm:$0xff]
    %v128 = vld [vmem:[#allocation7 + $0x238] sm:$0xff]
    %v129 = vld [vmem:[%s3] sm:$0xf]
    %v131 = vlaneseq
    %v132 = vshrl.u32 %v131, 7
    %v133 = vsub.s32 0, %v132
    %v134 = vrot.slane %v129, %v133
    %v135 = vlaneseq
    %v136 = vshrl.u32 %v135, 7
    %v137 = vsub.s32 1, %v136
    %v138 = vrot.slane %v129, %v137
    %v139 = vlaneseq
    %v140 = vshrl.u32 %v139, 7
    %v141 = vsub.s32 2, %v140
    %v142 = vrot.slane %v129, %v141
    %v143 = vlaneseq
    %v144 = vshrl.u32 %v143, 7
    %v145 = vsub.s32 3, %v144
    %v146 = vrot.slane %v129, %v145
    %vm151 = vcmask 130048
    %v153 = vsel %vm151, %v56, 0
    %155 = vmatprep.subr.mxu0 %v118
    %156 = vmatpush1.msra.mxu0 %v117
    %157 = vmatprep.subr.mxu0 %v114
    %158 = vmatpush1.msra.mxu0 %v113
    %159 = vmatprep.subr.mxu0 %v110
    %160 = vmatpush1.msra.mxu0 %v109
    %161 = vmatprep.subr.mxu0 %v106
    %162 = vmatpush1.msra.mxu0 %v105
    %163 = vmatprep.subr.mxu0 %v102
    %164 = vmatpush1.msra.mxu0 %v101
    %165 = vmatprep.subr.mxu0 %v98
    %166 = vmatpush1.msra.mxu0 %v97
    %167 = vmatprep.subr.mxu0 %v94
    %168 = vmatpush1.msra.mxu0 %v93
    %169 = vmatprep.subr.mxu0 %v90
    %170 = vmatpush1.msra.mxu0 %v89
    %171 = vmatprep.subr.mxu0 %v86
    %172 = vmatpush1.msra.mxu0 %v85
    %173 = vmatprep.subr.mxu0 %v82
    %174 = vmatpush1.msra.mxu0 %v81
    %175 = vmatprep.subr.mxu0 %v78
    %176 = vmatpush1.msra.mxu0 %v77
    %177 = vmatprep.subr.mxu0 %v74
    %178 = vmatpush1.msra.mxu0 %v73
    %179 = vmatprep.subr.mxu0 %v70
    %180 = vmatpush1.msra.mxu0 %v69
    %181 = vmatprep.subr.mxu0 %v66
    %182 = vmatpush1.msra.mxu0 %v65
    %183 = vmatprep.subr.mxu0 %v62
    %184 = vmatpush1.msra.mxu0 %v61
    %185 = vmatprep.subr.mxu0 %v58
    %186 = vmatpush1.msra.mxu0 %v57
    %187 = vmatprep.subr.mxu0 0.0
    %188 = vmatpush2.msra.mxu0 0.0
    %189 = vmatprep.subr.mxu0 0.0
    %190 = vmatpush2.msra.mxu0 0.0
    %191 = vmatprep.subr.mxu0 0.0
    %192 = vmatpush2.msra.mxu0 0.0
    %193 = vmatprep.subr.mxu0 0.0
    %194 = vmatpush2.msra.mxu0 0.0
    %195 = vmatprep.subr.mxu0 0.0
    %196 = vmatpush2.msra.mxu0 0.0
    %197 = vmatprep.subr.mxu0 0.0
    %198 = vmatpush2.msra.mxu0 0.0
    %199 = vmatprep.subr.mxu0 0.0
    %200 = vmatpush2.msra.mxu0 0.0
    %201 = vmatprep.subr.mxu0 0.0
    %202 = vmatpush2.msra.mxu0 0.0
    %203 = vmatprep.subr.mxu0 0.0
    %204 = vmatpush2.msra.mxu0 0.0
    %205 = vmatprep.subr.mxu0 0.0
    %206 = vmatpush2.msra.mxu0 0.0
    %207 = vmatprep.subr.mxu0 0.0
    %208 = vmatpush2.msra.mxu0 0.0
    %209 = vmatprep.subr.mxu0 0.0
    %210 = vmatpush2.msra.mxu0 0.0
    %211 = vmatprep.subr.mxu0 0.0
    %212 = vmatpush2.msra.mxu0 0.0
    %213 = vmatprep.subr.mxu0 0.0
    %214 = vmatpush2.msra.mxu0 0.0
    %215 = vmatprep.subr.mxu0 %v126
    %216 = vmatpush2.msra.mxu0 %v125
    %217 = vmatprep.subr.mxu0 %v122
    %218 = vmatpush2.msra.mxu0 %v121
    %219 = vmatprep.mubr.f32.mxu0 %v153
    %220 = vmatmul.mubr.f32.gmra.mxu0 %v55
    %v221 = vpop.f32.mrf.mxu0
    %v222 = vadd.f32 %v134, %v221
    %v223 = vpop.f32.mrf.mxu0
    %v224 = vadd.f32 %v138, %v223
    %225 = vdwg.mxu0
    %226 = vmatprep.subr.mxu0 %v120
    %227 = vmatpush1.msra.mxu0 %v119
    %228 = vmatprep.subr.mxu0 %v116
    %229 = vmatpush1.msra.mxu0 %v115
    %230 = vmatprep.subr.mxu0 %v112
    %231 = vmatpush1.msra.mxu0 %v111
    %232 = vmatprep.subr.mxu0 %v108
    %233 = vmatpush1.msra.mxu0 %v107
    %234 = vmatprep.subr.mxu0 %v104
    %235 = vmatpush1.msra.mxu0 %v103
    %236 = vmatprep.subr.mxu0 %v100
    %237 = vmatpush1.msra.mxu0 %v99
    %238 = vmatprep.subr.mxu0 %v96
    %239 = vmatpush1.msra.mxu0 %v95
    %240 = vmatprep.subr.mxu0 %v92
    %241 = vmatpush1.msra.mxu0 %v91
    %242 = vmatprep.subr.mxu0 %v88
    %243 = vmatpush1.msra.mxu0 %v87
    %244 = vmatprep.subr.mxu0 %v84
    %245 = vmatpush1.msra.mxu0 %v83
    %246 = vmatprep.subr.mxu0 %v80
    %247 = vmatpush1.msra.mxu0 %v79
    %248 = vmatprep.subr.mxu0 %v76
    %249 = vmatpush1.msra.mxu0 %v75
    %250 = vmatprep.subr.mxu0 %v72
    %251 = vmatpush1.msra.mxu0 %v71
    %252 = vmatprep.subr.mxu0 %v68
    %253 = vmatpush1.msra.mxu0 %v67
    %254 = vmatprep.subr.mxu0 %v64
    %255 = vmatpush1.msra.mxu0 %v63
    %256 = vmatprep.subr.mxu0 %v60
    %257 = vmatpush1.msra.mxu0 %v59
    %258 = vmatprep.subr.mxu0 0.0
    %259 = vmatpush2.msra.mxu0 0.0
    %260 = vmatprep.subr.mxu0 0.0
    %261 = vmatpush2.msra.mxu0 0.0
    %262 = vmatprep.subr.mxu0 0.0
    %263 = vmatpush2.msra.mxu0 0.0
    %264 = vmatprep.subr.mxu0 0.0
    %265 = vmatpush2.msra.mxu0 0.0
    %266 = vmatprep.subr.mxu0 0.0
    %267 = vmatpush2.msra.mxu0 0.0
    %268 = vmatprep.subr.mxu0 0.0
    %269 = vmatpush2.msra.mxu0 0.0
    %270 = vmatprep.subr.mxu0 0.0
    %271 = vmatpush2.msra.mxu0 0.0
    %272 = vmatprep.subr.mxu0 0.0
    %273 = vmatpush2.msra.mxu0 0.0
    %274 = vmatprep.subr.mxu0 0.0
    %275 = vmatpush2.msra.mxu0 0.0
    %276 = vmatprep.subr.mxu0 0.0
    %277 = vmatpush2.msra.mxu0 0.0
    %278 = vmatprep.subr.mxu0 0.0
    %279 = vmatpush2.msra.mxu0 0.0
    %280 = vmatprep.subr.mxu0 0.0
    %281 = vmatpush2.msra.mxu0 0.0
    %282 = vmatprep.subr.mxu0 0.0
    %283 = vmatpush2.msra.mxu0 0.0
    %284 = vmatprep.subr.mxu0 0.0
    %285 = vmatpush2.msra.mxu0 0.0
    %286 = vmatprep.subr.mxu0 %v128
    %287 = vmatpush2.msra.mxu0 %v127
    %288 = vmatprep.subr.mxu0 %v124
    %289 = vmatpush2.msra.mxu0 %v123
    %290 = vmatprep.mubr.f32.mxu0 %v153
    %291 = vmatmul.mubr.f32.gmra.mxu0 %v55
    %v292 = vpop.f32.mrf.mxu0
    %v293 = vadd.f32 %v142, %v292
    %v294 = vpop.f32.mrf.mxu0
    %v295 = vadd.f32 %v146, %v294
    %296 = vdwg.mxu0
    %v297 = vxor.u32 %v222, 2147483648
    %v298 = vmul.f32 %v297, 1.442695
    %v299 = vpow.pop %v298
    %v300 = vadd.f32 %v299, 1.0
    %v301 = vrcp.pop %v300
    %v302 = vmul.f32 1.0, %v301
    %v303 = vxor.u32 %v224, 2147483648
    %v304 = vmul.f32 %v303, 1.442695
    %v305 = vpow.pop %v304
    %v306 = vadd.f32 %v305, 1.0
    %v307 = vrcp.pop %v306
    %v308 = vmul.f32 1.0, %v307
    %v309 = vmul.f32 %v302, %v295
    %v310 = vadd.f32 %v293, %v309
    %v311 = vtanh.pop %v310
    %v312 = vld [vmem:[#allocation5] sm:$0xff]
    %v313 = vsub.f32 1.0, %v308
    %v314 = vmul.f32 %v313, %v311
    %v315 = vmul.f32 %v308, %v312
    %v316 = vadd.f32 %v314, %v315
    %317 = vst [vmem:[#allocation8] sm:$0xff] %v316
    // Predicated region
    $region30: #{tpu_custom_call.1} parent=1 // pred_check
      _
    $region31: #{tpu_custom_call.1} parent=1 // pred_check_branch
      %319 = sbr.rel (0) target = $region33
    $region32: #{tpu_custom_call.1} parent=1 // pred_region
      %s321 = ssub.s32 128, 128
      %322 = vsyncadd [#allocation4], %s321
      %s324 = sshll.u32 [#allocation8], 4
      %s325 = int_to_ptr.vmem [resolvable:$true] %s324
      %327 = dma.vmem_to_hbm [thread:$0]  %s325, 128, %s4, [#allocation4]
    $region33: #{tpu_custom_call.1} parent=1 // pred_fallthru
      _
    // Predicated region
    $region34: #{tpu_custom_call.1} parent=1 // pred_check
      _
    $region35: #{tpu_custom_call.1} parent=1 // pred_check_branch
      %329 = sbr.rel (0) target = $region37
    $region36: #{tpu_custom_call.1} parent=1 // pred_region
      %330 = dma.done [#allocation4], 128
    $region37: #{tpu_custom_call.1} parent=1 // pred_fallthru
      _
    %331 = vsyncpa [#allocation3], 1
    %332 = vsyncpa [#allocation6], 1
    %333 = vsyncpa [#allocation4], 1

</llo_original>
